<compile_context>
chip_gen: v7x
topology: tpu7x:2x2x1
jax: 0.10.0
libtpu: 0.0.40
codegen_flags: <defaults>
</compile_context>

<pallas_src>
import functools

import jax
import jax.numpy as jnp
from jax.experimental import pallas as pl
from jax.experimental.pallas import tpu as pltpu


def _sin_feature_kernel(s_ref, o_ref):
    # s_ref: (2, BLOCK_R, LANE_C) stacked [x0; x1] tile; o_ref: (BLOCK_R, LANE_C).
    a = s_ref[0].astype(jnp.float32)
    b = s_ref[1].astype(jnp.float32)
    o_ref[...] = (jnp.sin(a * jnp.pi) * jnp.sin(b * jnp.pi)).astype(o_ref.dtype)


def _cdiv(a, b):
    return -(-a // b)


def _round_up(v, m):
    return ((v + m - 1) // m) * m


@functools.lru_cache(maxsize=1)
def _vmem_capacity_bytes():
    try:
        return int(pltpu.get_tpu_info().vmem_capacity_bytes)
    except Exception:
        return 64 * 1024 * 1024  # conservative (v7x-sized) fallback


def _make_in_spec(block_r, lane_c, n_blocks):
    idx = lambda i: (0, i, 0)
    if n_blocks >= 3:
        # 3-deep input buffering hides DMA issue latency at block boundaries.
        try:
            return pl.BlockSpec((2, block_r, lane_c), idx,
                                pipeline_mode=pl.Buffered(3))
        except Exception:  # older jax without pipeline_mode / Buffered
            pass
    return pl.BlockSpec((2, block_r, lane_c), idx)


def my_feature(x):
    """x: (N, D) with D >= 2. Returns (N,) = sin(pi*x[:,0]) * sin(pi*x[:,1])."""
    n = x.shape[0]
    assert x.ndim == 2 and x.shape[1] >= 2, "need at least 2 coordinate columns"

    itemsize = jnp.dtype(x.dtype).itemsize
    # sublane multiple for the I/O dtype: f32 -> 8, bf16 -> 16, int8/fp8 -> 32.
    sub = max(8, 8 * (4 // max(1, itemsize)))

    # ---- lane-dense slab layout (r, lane_c): r % sub == 0, lane_c % 128 == 0 ----
    lane_c = 1024 if n >= (1 << 20) else 128
    rows = _cdiv(n, lane_c)

    big_vmem = _vmem_capacity_bytes() >= 100 * 1024 * 1024   # v5e/v6e: 128 MiB
    vmem_limit = (64 if big_vmem else 40) * 1024 * 1024
    # per-column block target: ~4 MiB on v5e/v6e, ~2 MiB on v7x (64 MiB VMEM)
    max_blk_bytes = (4 if big_vmem else 2) * 1024 * 1024
    max_block_r = max(sub, (max_blk_bytes // (lane_c * itemsize)) // sub * sub)

    slab_bytes = _round_up(rows, sub) * lane_c * itemsize     # per column
    if slab_bytes <= 256 * 1024:
        # tiny problem: one full-slab block, single grid step
        block_r = _round_up(rows, sub)
        n_blocks = 1
    else:
        # pipelined multi-step grid: >= 4 steps, even count (v7x 2-TC balance)
        n_blocks = max(4, 2 * _cdiv(rows, 2 * max_block_r))
        block_r = _round_up(_cdiv(rows, n_blocks), sub)
    r = n_blocks * block_r
    n_pad = r * lane_c

    # ---- single fused pre-pass over x: cols 0/1 -> transpose -> pad -> reshape.
    # Zero padding is harmless: sin(0) * sin(0) = 0, and it is sliced off below.
    stacked = jnp.transpose(x[:, :2])                  # (2, N)
    if n_pad != n:
        stacked = jnp.pad(stacked, ((0, 0), (0, n_pad - n)))
    stacked = stacked.reshape(2, r, lane_c)            # (2, r, lane_c)

    out = pl.pallas_call(
        _sin_feature_kernel,
        out_shape=jax.ShapeDtypeStruct((r, lane_c), x.dtype),
        grid=(n_blocks,),
        in_specs=[_make_in_spec(block_r, lane_c, n_blocks)],
        out_specs=pl.BlockSpec((block_r, lane_c), lambda i: (i, 0)),
        compiler_params=pltpu.CompilerParams(
            # parallel row-block axis: shards evenly across v7x's 2 TensorCores
            dimension_semantics=("parallel",),
            vmem_limit_bytes=vmem_limit,
        ),
    )(stacked)

    # Free when n_pad == n; otherwise one small slice pass to return exact (N,).
    return out.reshape(-1)[:n]


if __name__ == "__main__":
    feature = jax.jit(my_feature)

    # Small shape consistent with the Poisson example: (N, 2) coordinates.
    key = jax.random.PRNGKey(0)
    N, D = 256, 2
    x = jax.random.uniform(key, (N, D), dtype=jnp.float32)

    y = feature(x)
    jax.block_until_ready(y)
    y_ref = jnp.sin(x[:, 0] * jnp.pi) * jnp.sin(x[:, 1] * jnp.pi)
    assert y.shape == (N,)
    assert jnp.allclose(y, y_ref, atol=1e-5, rtol=1e-5)

    # Also exercise the multi-step pipelined path (even grid, Buffered inputs).
    N2 = 70_000
    x2 = jax.random.uniform(jax.random.PRNGKey(0), (N2, D), dtype=jnp.float32)
    y2 = feature(x2)
    jax.block_until_ready(y2)
    y2_ref = jnp.sin(x2[:, 0] * jnp.pi) * jnp.sin(x2[:, 1] * jnp.pi)
    assert y2.shape == (N2,)
    assert jnp.allclose(y2, y2_ref, atol=1e-5, rtol=1e-5)

    print("KERNEL_OK")
</pallas_src>

<mosaic_0001>
module attributes {stable_mosaic.version = 11 : i64} {
  func.func @_sin_feature_kernel(%arg0: i32, %arg1: memref<2x8x128xf32, #tpu.memory_space<vmem>>, %arg2: memref<8x128xf32, #tpu.memory_space<vmem>>) attributes {dimension_semantics = [#tpu.dimension_semantics<parallel>], iteration_bounds = array<i64: 1>, scalar_prefetch = 0 : i64, scratch_operands = 0 : i64, tpu.core_type = #tpu.core_type<tc>, window_params = [{transform_indices = @transform_0, window_bounds = array<i64: 2, 8, 128>}, {transform_indices = @transform_1, window_bounds = array<i64: 8, 128>}]} {
    %c0 = arith.constant 0 : index
    %c0_0 = arith.constant 0 : index
    %c0_1 = arith.constant 0 : index
    %0 = vector.load %arg1[%c0, %c0_0, %c0_1] : memref<2x8x128xf32, #tpu.memory_space<vmem>>, vector<1x8x128xf32>
    %1 = vector.shape_cast %0 : vector<1x8x128xf32> to vector<8x128xf32>
    %c1 = arith.constant 1 : index
    %c0_2 = arith.constant 0 : index
    %c0_3 = arith.constant 0 : index
    %2 = vector.load %arg1[%c1, %c0_2, %c0_3] : memref<2x8x128xf32, #tpu.memory_space<vmem>>, vector<1x8x128xf32>
    %3 = vector.shape_cast %2 : vector<1x8x128xf32> to vector<8x128xf32>
    %cst = arith.constant 3.14159274 : f32
    %4 = vector.broadcast %cst : f32 to vector<8x128xf32>
    %5 = arith.mulf %1, %4 : vector<8x128xf32>
    %6 = math.sin %5 : vector<8x128xf32>
    %cst_4 = arith.constant 3.14159274 : f32
    %7 = vector.broadcast %cst_4 : f32 to vector<8x128xf32>
    %8 = arith.mulf %3, %7 : vector<8x128xf32>
    %9 = math.sin %8 : vector<8x128xf32>
    %10 = arith.mulf %6, %9 : vector<8x128xf32>
    %c0_5 = arith.constant 0 : index
    %c0_6 = arith.constant 0 : index
    %11 = vector.load %arg2[%c0_5, %c0_6] : memref<8x128xf32, #tpu.memory_space<vmem>>, vector<8x128xf32>
    tpu.vector_store %arg2[%c0_5, %c0_6], %10 {strides = array<i32>} : memref<8x128xf32, #tpu.memory_space<vmem>>, vector<8x128xf32>,
    return
  }
  func.func @transform_0(%arg0: i32) -> (i32, i32, i32) {
    %c0_i32 = arith.constant 0 : i32
    %c0_i32_0 = arith.constant 0 : i32
    %c0_i32_1 = arith.constant 0 : i32
    return %c0_i32, %arg0, %c0_i32_0 : i32, i32, i32
  }
  func.func @transform_1(%arg0: i32) -> (i32, i32) {
    %c0_i32 = arith.constant 0 : i32
    %c0_i32_0 = arith.constant 0 : i32
    return %arg0, %c0_i32 : i32, i32
  }
}

</mosaic_0001>

<llo_original>
// kernel: my_feature.1
$region0: #{my_feature.1}
  #allocation0 [shape = 'u32[]', space=smem, size = 0x4, offset = 0x4, fixed_abs, tag = 'smem constant byte address 0x4 - core index']
  #allocation1 [shape = 'u32[144,128]{1,0:T(1,128)}', space=vmem, size = 0x12000, scoped, tag = 'internal scratch']
  %s0 = inlined_call_operand.vmem [shape: f32[2,8,128], index: 0, kind: input, shape index: {}]
  %s1 = inlined_call_operand.vmem [shape: f32[8,128], index: 1, kind: output, shape index: {}]
  %s2 = sld [smem:[#allocation0]]
  $region14: #{my_feature.1} parent=0
    _
  %s4 = ssub.s32 1, %s2
  %s5 = scalar_select 0, %s4, %s2
  // Predicated region
  $region2: #{my_feature.1} parent=0 // pred_check
    _
  $region3: #{my_feature.1} parent=0 // pred_check_branch
    %7 = sbr.rel (0) target = $region5
  $region4: #{my_feature.1} parent=0 // pred_region
    _
  $region5: #{my_feature.1} parent=0 // pred_fallthru
    _
  %v8 = vld [vmem:[%s0] sm:$0xff]
  %s9 = scalar_lea.vmem %s0, 8
  %v10 = vld [vmem:[%s9] sm:$0xff]
  %v11 = vmul.f32 %v8, 3.1415927
  %v12 = vand.u32 2147483647, %v11
  %vm13 = vcmp.le.f32.partialorder %v12, 0.7853982
  %vm14 = vcmp.lt.s32.totalorder %v11, 0
  %v15 = vand.u32 %v11, 2139095040
  %v16 = vshrl.u32 %v15, 23
  %v17 = vsub.s32 %v16, 127
  %v18 = vand.u32 2147483647, %v11
  %v19 = vand.u32 %v18, 8388607
  %v20 = vor.u32 %v19, 8388608
  %v21 = vsub.s32 0, %v20
  %v22 = vadd.s32 %v17, 1
  %vm23 = vcmp.gt.s32.totalorder %v22, 0
  %v24 = vsel %vm23, %v22, 0
  %v25 = vshrl.u32 %v24, 5
  %v26 = vand.u32 %v24, 31
  %v27 = vsub.s32 32, %v26
  %v28 = vshrl.u32 683565275, %v27
  %v29 = vshll.u32 683565275, %v26
  %v30 = vshrl.u32 2475754826, %v27
  %v31 = vor.u32 %v29, %v30
  %v32 = vshll.u32 2475754826, %v26
  %v33 = vshrl.u32 2131351028, %v27
  %v34 = vor.u32 %v32, %v33
  %v35 = vshll.u32 2131351028, %v26
  %v36 = vshrl.u32 2102212464, %v27
  %v37 = vor.u32 %v35, %v36
  %v38 = vshll.u32 2102212464, %v26
  %v39 = vshrl.u32 920167782, %v27
  %v40 = vor.u32 %v38, %v39
  %v41 = vshll.u32 920167782, %v26
  %v42 = vshrl.u32 1326507024, %v27
  %v43 = vor.u32 %v41, %v42
  %vm44 = vcmp.lt.s32.totalorder %v25, 1
  %vm45 = vcmp.lt.s32.totalorder %v25, 2
  %vm46 = vcmp.lt.s32.totalorder %v25, 3
  %vm47 = vcmp.lt.s32.totalorder %v25, 4
  %v48 = vsel %vm44, %v28, %v31
  %v49 = vsel %vm47, %v37, 2102212464
  %v50 = vsel %vm46, %v34, %v49
  %v51 = vsel %vm45, %v48, %v50
  %v52 = vsel %vm44, %v31, %v34
  %v53 = vsel %vm47, %v40, 920167782
  %v54 = vsel %vm46, %v37, %v53
  %v55 = vsel %vm45, %v52, %v54
  %v56 = vsel %vm44, %v34, %v37
  %v57 = vsel %vm47, %v43, 1326507024
  %v58 = vsel %vm46, %v40, %v57
  %v59 = vsel %vm45, %v56, %v58
  %v60 = vshll.u32 %v20, 8
  %v61 = vmul.u32.u64.compose %v60, %v59
  %v62 = vextract.low.u32 %v61
  %v63 = vextract.high.u32 %v61
  %v64 = vmul.u32.u64.compose %v60, %v55
  %v65 = vextract.low.u32 %v64
  %v66 = vextract.high.u32 %v64
  %v67 = vmul.u32 %v60, %v51
  %v68 = vadd.s32 %v63, %v65
  %vm69 = vc.u32 %v63, %v65
  %v70 = vadd.s32 %v66, 1
  %v71 = vsel %vm69, %v70, %v66
  %v72 = vadd.s32 %v67, %v71
  %v73 = vadd.s32 %v72, 536870912
  %v74 = vshrl.u32 %v73, 30
  %v75 = vshll.u32 %v74, 30
  %v76 = vsub.s32 %v72, %v75
  %vm77 = vcmp.lt.s32.totalorder %v76, 0
  %v78 = vsub.s32 0, %v76
  %v79 = vsel %vm77, %v78, %v76
  %v80 = vclz %v79
  %v81 = vsub.s32 %v80, 2
  %vm82 = vcmp.gt.s32.totalorder 0, %v81
  %v83 = vsel %vm82, 0, %v81
  %v84 = vsub.s32 32, %v83
  %v85 = vshll.u32 %v76, %v83
  %v86 = vshrl.u32 %v68, %v84
  %v87 = vor.u32 %v85, %v86
  %v88 = vsub.s32 4294967266, %v83
  %v89 = vadd.s32 %v88, 127
  %v90 = vshll.u32 %v89, 23
  %v91 = vor.u32 4788187, %v90
  %v92 = vand.u32 2147483647, %v91
  %v94 = vcvt.s32.f32 %v87
  %v95 = vmul.f32 %v94, %v92
  %v96 = vxor.u32 %v95, 2147483648
  %v97 = vsel %vm14, %v96, %v95
  %v98 = vsub.s32 4, %v74
  %v99 = vsel %vm14, %v98, %v74
  %v100 = vsel %vm13, %v11, %v97
  %v101 = vsel %vm13, 0, %v99
  %v102 = vcosq.f32.pop %v100
  %v103 = vsinq.f32.pop %v100
  %vm104 = vweird.f32 %v11
  %v105 = vadd.s32 %v101, 3
  %v106 = vand.u32 %v105, 3
  %vm107 = vcmp.lt.s32.totalorder %v106, 2
  %vm108 = vcmp.eq.s32.totalorder %v106, 0
  %v109 = vxor.u32 %v103, 2147483648
  %v110 = vsel %vm108, %v102, %v109
  %vm111 = vcmp.eq.s32.totalorder %v106, 2
  %v112 = vxor.u32 %v102, 2147483648
  %v113 = vsel %vm111, %v112, %v103
  %v114 = vsel %vm107, %v110, %v113
  %v115 = vsel %vm104, nan, %v114
  %v116 = vmul.f32 %v10, 3.1415927
  %v117 = vand.u32 2147483647, %v116
  %vm118 = vcmp.le.f32.partialorder %v117, 0.7853982
  %vm119 = vcmp.lt.s32.totalorder %v116, 0
  %v120 = vand.u32 %v116, 2139095040
  %v121 = vshrl.u32 %v120, 23
  %v122 = vsub.s32 %v121, 127
  %v123 = vand.u32 2147483647, %v116
  %v124 = vand.u32 %v123, 8388607
  %v125 = vor.u32 %v124, 8388608
  %v126 = vsub.s32 0, %v125
  %v127 = vadd.s32 %v122, 1
  %vm128 = vcmp.gt.s32.totalorder %v127, 0
  %v129 = vsel %vm128, %v127, 0
  %v130 = vshrl.u32 %v129, 5
  %v131 = vand.u32 %v129, 31
  %v132 = vsub.s32 32, %v131
  %v133 = vshrl.u32 683565275, %v132
  %v134 = vshll.u32 683565275, %v131
  %v135 = vshrl.u32 2475754826, %v132
  %v136 = vor.u32 %v134, %v135
  %v137 = vshll.u32 2475754826, %v131
  %v138 = vshrl.u32 2131351028, %v132
  %v139 = vor.u32 %v137, %v138
  %v140 = vshll.u32 2131351028, %v131
  %v141 = vshrl.u32 2102212464, %v132
  %v142 = vor.u32 %v140, %v141
  %v143 = vshll.u32 2102212464, %v131
  %v144 = vshrl.u32 920167782, %v132
  %v145 = vor.u32 %v143, %v144
  %v146 = vshll.u32 920167782, %v131
  %v147 = vshrl.u32 1326507024, %v132
  %v148 = vor.u32 %v146, %v147
  %vm149 = vcmp.lt.s32.totalorder %v130, 1
  %vm150 = vcmp.lt.s32.totalorder %v130, 2
  %vm151 = vcmp.lt.s32.totalorder %v130, 3
  %vm152 = vcmp.lt.s32.totalorder %v130, 4
  %v153 = vsel %vm149, %v133, %v136
  %v154 = vsel %vm152, %v142, 2102212464
  %v155 = vsel %vm151, %v139, %v154
  %v156 = vsel %vm150, %v153, %v155
  %v157 = vsel %vm149, %v136, %v139
  %v158 = vsel %vm152, %v145, 920167782
  %v159 = vsel %vm151, %v142, %v158
  %v160 = vsel %vm150, %v157, %v159
  %v161 = vsel %vm149, %v139, %v142
  %v162 = vsel %vm152, %v148, 1326507024
  %v163 = vsel %vm151, %v145, %v162
  %v164 = vsel %vm150, %v161, %v163
  %v165 = vshll.u32 %v125, 8
  %v166 = vmul.u32.u64.compose %v165, %v164
  %v167 = vextract.low.u32 %v166
  %v168 = vextract.high.u32 %v166
  %v169 = vmul.u32.u64.compose %v165, %v160
  %v170 = vextract.low.u32 %v169
  %v171 = vextract.high.u32 %v169
  %v172 = vmul.u32 %v165, %v156
  %v173 = vadd.s32 %v168, %v170
  %vm174 = vc.u32 %v168, %v170
  %v175 = vadd.s32 %v171, 1
  %v176 = vsel %vm174, %v175, %v171
  %v177 = vadd.s32 %v172, %v176
  %v178 = vadd.s32 %v177, 536870912
  %v179 = vshrl.u32 %v178, 30
  %v180 = vshll.u32 %v179, 30
  %v181 = vsub.s32 %v177, %v180
  %vm182 = vcmp.lt.s32.totalorder %v181, 0
  %v183 = vsub.s32 0, %v181
  %v184 = vsel %vm182, %v183, %v181
  %v185 = vclz %v184
  %v186 = vsub.s32 %v185, 2
  %vm187 = vcmp.gt.s32.totalorder 0, %v186
  %v188 = vsel %vm187, 0, %v186
  %v189 = vsub.s32 32, %v188
  %v190 = vshll.u32 %v181, %v188
  %v191 = vshrl.u32 %v173, %v189
  %v192 = vor.u32 %v190, %v191
  %v193 = vsub.s32 4294967266, %v188
  %v194 = vadd.s32 %v193, 127
  %v195 = vshll.u32 %v194, 23
  %v196 = vor.u32 4788187, %v195
  %v197 = vand.u32 2147483647, %v196
  %v199 = vcvt.s32.f32 %v192
  %v200 = vmul.f32 %v199, %v197
  %v201 = vxor.u32 %v200, 2147483648
  %v202 = vsel %vm119, %v201, %v200
  %v203 = vsub.s32 4, %v179
  %v204 = vsel %vm119, %v203, %v179
  %v205 = vsel %vm118, %v116, %v202
  %v206 = vsel %vm118, 0, %v204
  %v207 = vcosq.f32.pop %v205
  %v208 = vsinq.f32.pop %v205
  %vm209 = vweird.f32 %v116
  %v210 = vadd.s32 %v206, 3
  %v211 = vand.u32 %v210, 3
  %vm212 = vcmp.lt.s32.totalorder %v211, 2
  %vm213 = vcmp.eq.s32.totalorder %v211, 0
  %v214 = vxor.u32 %v208, 2147483648
  %v215 = vsel %vm213, %v207, %v214
  %vm216 = vcmp.eq.s32.totalorder %v211, 2
  %v217 = vxor.u32 %v207, 2147483648
  %v218 = vsel %vm216, %v217, %v208
  %v219 = vsel %vm212, %v215, %v218
  %v220 = vsel %vm209, nan, %v219
  %v221 = vmul.f32 %v115, %v220
  %222 = vst [vmem:[%s1] sm:$0xff] %v221
  // Predicated region
  $region6: #{my_feature.1} parent=0 // pred_check
    _
  $region7: #{my_feature.1} parent=0 // pred_check_branch
    %224 = sbr.rel (0) target = $region9
  $region8: #{my_feature.1} parent=0 // pred_region
    _
  $region9: #{my_feature.1} parent=0 // pred_fallthru
    _
  // Predicated region
  $region10: #{my_feature.1} parent=0 // pred_check
    _
  $region11: #{my_feature.1} parent=0 // pred_check_branch
    %226 = sbr.rel (0) target = $region13
  $region12: #{my_feature.1} parent=0 // pred_region
    _
  $region13: #{my_feature.1} parent=0 // pred_fallthru
    _

</llo_original>
